<compile_context>
chip_gen: v6e
topology: v6e:2x2x1
jax: 0.10.0
libtpu: 0.0.40
codegen_flags: <defaults>
</compile_context>

<pallas_src>
import functools

import jax
import jax.numpy as jnp
from jax import lax
from jax.experimental import pallas as pl
from jax.experimental.pallas import tpu as pltpu


def _round_up(x, m):
    return (x + m - 1) // m * m


@functools.lru_cache(maxsize=None)
def _vmem_budget_bytes():
    """Physical VMEM per core minus headroom for Mosaic internal scratch."""
    phys = 64 * 1024 * 1024
    try:
        info = pltpu.get_tpu_info()
        phys = int(getattr(info, "vmem_capacity_bytes", phys) or phys)
    except Exception:
        pass
    # ~52 MiB on 64 MiB/TC parts (v7x), capped at ~112 MiB on 128 MiB parts
    # (v5e / v6e) -- never claim the entire physical VMEM.
    return max(32 * 1024 * 1024,
               min(phys - 12 * 1024 * 1024, 112 * 1024 * 1024))


def _estimate_block_vmem(tm, th, c_p, out_bytes):
    kin = 2 * tm * c_p * 2           # bf16 activation stream, double-buffered
    wk = 2 * c_p * th * 2            # bf16 Wk^T stream
    wv = 2 * th * c_p * 2            # bf16 Wv^T stream
    out = 2 * tm * c_p * out_bytes   # output stream
    acc = tm * c_p * 4               # f32 accumulator scratch
    tmp = tm * th * (4 + 2)          # f32 hidden tile + bf16 cast temp
    return kin + wk + wv + out + acc + tmp


def _pick_tiles(n, c_p, h, out_bytes, budget, row_tile, hidden_tile):
    big_vmem = budget >= 96 * 1024 * 1024
    if row_tile is None:
        row_tile = 768 if big_vmem else 512      # v6e wants the biggest M
    if hidden_tile is None:
        hidden_tile = 1024 if big_vmem else 512
    tm = row_tile if n >= row_tile else _round_up(n, 16)
    th = min(hidden_tile, _round_up(h, 128))
    # shrink until the (double-buffered) block working set fits the budget
    while _estimate_block_vmem(tm, th, c_p, out_bytes) > budget:
        if th > 128 and th >= tm:
            th //= 2
        elif tm > 64:
            tm //= 2
        elif th > 128:
            th //= 2
        else:
            break
    return tm, th


def _cmix_ffn_kernel(kin_ref, wkt_ref, wvt_ref, o_ref, *scratch, num_h):
    # relu(k_in @ Wk^T)^2 for this hidden tile: bf16 operands, f32 MXU acc.
    h = jnp.dot(kin_ref[...], wkt_ref[...], preferred_element_type=jnp.float32)
    h = jnp.maximum(h, 0.0)
    h = (h * h).astype(wvt_ref.dtype)             # relu(.)^2 in f32 -> bf16
    contrib = jnp.dot(h, wvt_ref[...], preferred_element_type=jnp.float32)

    if num_h == 1:                                 # single hidden tile: no acc
        o_ref[...] = contrib.astype(o_ref.dtype)
        return

    acc_ref = scratch[0]
    h_idx = pl.program_id(1)

    @pl.when(h_idx == 0)
    def _():
        acc_ref[...] = contrib                     # no zero-init RMW pass

    @pl.when(jnp.logical_and(h_idx > 0, h_idx < num_h - 1))
    def _():
        acc_ref[...] += contrib

    @pl.when(h_idx == num_h - 1)
    def _():
        # final output written straight from acc + contrib (skips one full
        # (TM, C) f32 accumulator store/load pass; biggest win on v5e).
        o_ref[...] = (acc_ref[...] + contrib).astype(o_ref.dtype)


@functools.partial(jax.jit,
                   static_argnames=("row_tile", "hidden_tile", "out_dtype"))
def rwkv_cmix_x070(x, cmix_shift_state, x_k, w_key, w_value,
                   attention_mask=None, row_tile=None, hidden_tile=None,
                   out_dtype=None):
    """Forward pass of RWKV_CMix_x070.

    Args:
      x:                (B, T, C)
      cmix_shift_state: (B, C)     (layer_state.cmix_shift_states)
      x_k:              (1, 1, C)
      w_key:            (4C, C)    nn.Linear weight, (out, in) layout
      w_value:          (C, 4C)    nn.Linear weight, (out, in) layout
      attention_mask:   optional (B, T') with T' >= T
    Returns:
      (out (B, T, C), new_cmix_shift_state (B, C))
    """
    B, T, C = x.shape
    H = w_key.shape[0]                              # 4 * C
    out_dt = jnp.dtype(out_dtype) if out_dtype is not None else x.dtype

    # ---- one fused XLA pass: mask + causal token-shift + mix (+ bf16 cast) --
    if attention_mask is not None:
        x = x * attention_mask[:, -T:, None].astype(x.dtype)
    new_state = x[:, -1, :]
    xprev = jnp.concatenate(
        [cmix_shift_state[:, None, :].astype(x.dtype), x[:, :-1, :]], axis=1)
    k_in = x + (xprev - x) * x_k.reshape(1, 1, C)
    # TODO(synk): the shift still costs one fused elementwise pass over x; a
    # fully in-kernel variant needs pltpu.roll + per-tile boundary rows and
    # careful handling of batch boundaries inside a row tile.

    # ---- flatten rows and pad to lane/sublane-dense tile sizes ----
    N = B * T
    C_p = _round_up(C, 128)
    out_bytes = jnp.dtype(out_dt).itemsize
    budget = _vmem_budget_bytes()
    TM, TH = _pick_tiles(N, C_p, H, out_bytes, budget, row_tile, hidden_tile)
    N_p = _round_up(N, TM)
    H_p = _round_up(H, TH)
    num_h = H_p // TH

    def pad2(a, rows, cols):
        pr, pc = rows - a.shape[0], cols - a.shape[1]
        if pr or pc:
            a = jnp.pad(a, ((0, pr), (0, pc)))
        return a

    kin = pad2(k_in.reshape(N, C), N_p, C_p).astype(jnp.bfloat16)
    # Weights presented in (in, out) bf16 layout -> both dots are the natural
    # MXU orientation; no in-kernel transposes.
    # TODO(synk): in production store the transposed bf16 weights upstream so
    # this transpose/cast/pad pass is not paid once per call.
    wkt = pad2(w_key.T, C_p, H_p).astype(jnp.bfloat16)      # (C_p, H_p)
    wvt = pad2(w_value.T, H_p, C_p).astype(jnp.bfloat16)    # (H_p, C_p)

    grid = (N_p // TM, num_h)        # rows parallel, hidden reduction innermost

    scratch_shapes = []
    if num_h > 1:
        scratch_shapes.append(pltpu.VMEM((TM, C_p), jnp.float32))

    out_flat = pl.pallas_call(
        functools.partial(_cmix_ffn_kernel, num_h=num_h),
        out_shape=jax.ShapeDtypeStruct((N_p, C_p), out_dt),
        grid_spec=pltpu.PrefetchScalarGridSpec(
            num_scalar_prefetch=0,
            grid=grid,
            in_specs=[
                pl.BlockSpec((TM, C_p), lambda i, h: (i, 0)),   # k_in rows
                pl.BlockSpec((C_p, TH), lambda i, h: (0, h)),   # Wk^T tile
                pl.BlockSpec((TH, C_p), lambda i, h: (h, 0)),   # Wv^T tile
            ],
            out_specs=pl.BlockSpec((TM, C_p), lambda i, h: (i, 0)),
            scratch_shapes=scratch_shapes),
        compiler_params=pltpu.CompilerParams(
            dimension_semantics=("parallel", "arbitrary"),
            vmem_limit_bytes=int(budget)),
    )(kin, wkt, wvt)

    out = out_flat[:N, :C].reshape(B, T, C)
    return out, new_state


# ---------------------------- references ----------------------------------
def _reference_f32(x, state, x_k, w_key, w_value, attention_mask=None):
    B, T, C = x.shape
    if attention_mask is not None:
        x = x * attention_mask[:, -T:, None]
    xx = jnp.concatenate([state[:, None, :], x[:, :-1, :]], axis=1) - x
    k = x + xx * x_k
    k = jnp.maximum(k @ w_key.T, 0.0) ** 2
    return k @ w_value.T, x[:, -1, :]


def _reference_bf16(x, state, x_k, w_key, w_value, attention_mask=None):
    # mirrors the kernel's bf16-operand / f32-accumulation numerics
    B, T, C = x.shape
    if attention_mask is not None:
        x = x * attention_mask[:, -T:, None]
    xx = jnp.concatenate([state[:, None, :], x[:, :-1, :]], axis=1) - x
    k = (x + xx * x_k).reshape(B * T, C).astype(jnp.bfloat16)
    wk = w_key.astype(jnp.bfloat16)
    wv = w_value.astype(jnp.bfloat16)
    h = lax.dot_general(k, wk, (((1,), (1,)), ((), ())),
                        preferred_element_type=jnp.float32)
    h = (jnp.maximum(h, 0.0) ** 2).astype(jnp.bfloat16)
    out = lax.dot_general(h, wv, (((1,), (1,)), ((), ())),
                          preferred_element_type=jnp.float32)
    return out.reshape(B, T, C).astype(x.dtype), x[:, -1, :]


if __name__ == "__main__":
    # small config consistent with the module
    n_embd = 128      # C (multiple of 128 -> lane-dense, no padding)
    n_layer = 2
    layer_id = 0
    B, T = 2, 8

    # deterministic parameter init (mirrors __init__ shapes)
    ratio_1_to_almost0 = 1.0 - layer_id / n_layer
    ddd = jnp.arange(n_embd, dtype=jnp.float32) / n_embd
    x_k = (1.0 - ddd ** (ratio_1_to_almost0 ** 4)).reshape(1, 1, n_embd)

    key = jax.random.PRNGKey(0)
    k1, k2, k3, k4 = jax.random.split(key, 4)
    w_key = jax.random.normal(k1, (4 * n_embd, n_embd), jnp.float32) * 0.02
    w_value = jax.random.normal(k2, (n_embd, 4 * n_embd), jnp.float32) * 0.02

    x = jax.random.normal(k3, (B, T, n_embd), jnp.float32)
    cmix_state = jax.random.normal(k4, (B, n_embd), jnp.float32)

    # --- no-mask path ---
    out, new_state = rwkv_cmix_x070(x, cmix_state, x_k, w_key, w_value)
    out = jax.block_until_ready(out)
    new_state = jax.block_until_ready(new_state)

    ref_b, ref_state = _reference_bf16(x, cmix_state, x_k, w_key, w_value)
    ref_f, _ = _reference_f32(x, cmix_state, x_k, w_key, w_value)
    assert jnp.allclose(out, ref_b, atol=1e-3, rtol=1e-2), "bf16-ref mismatch"
    assert jnp.allclose(out, ref_f, atol=1e-2, rtol=5e-2), "f32-ref mismatch"
    assert jnp.allclose(new_state, ref_state, atol=1e-6, rtol=1e-6)

    # --- masked path ---
    mask = (jnp.arange(T)[None, :] >= 2).astype(jnp.float32)
    mask = jnp.tile(mask, (B, 1))
    out_m, state_m = rwkv_cmix_x070(x, cmix_state, x_k, w_key, w_value,
                                    attention_mask=mask)
    out_m = jax.block_until_ready(out_m)
    ref_bm, ref_state_m = _reference_bf16(x, cmix_state, x_k, w_key, w_value,
                                          attention_mask=mask)
    assert jnp.allclose(out_m, ref_bm, atol=1e-3, rtol=1e-2), "masked mismatch"
    assert jnp.allclose(state_m, ref_state_m, atol=1e-6, rtol=1e-6)

    print("KERNEL_OK")
</pallas_src>

<mosaic_0001>
module attributes {stable_mosaic.version = 11 : i64} {
  func.func @_cmix_ffn_kernel(%arg0: i32, %arg1: i32, %arg2: memref<16x128xbf16, #tpu.memory_space<vmem>>, %arg3: memref<128x512xbf16, #tpu.memory_space<vmem>>, %arg4: memref<512x128xbf16, #tpu.memory_space<vmem>>, %arg5: memref<16x128xf32, #tpu.memory_space<vmem>>) attributes {dimension_semantics = [#tpu.dimension_semantics<parallel>, #tpu.dimension_semantics<arbitrary>], iteration_bounds = array<i64: 1, 1>, scalar_prefetch = 0 : i64, scratch_operands = 0 : i64, tpu.core_type = #tpu.core_type<tc>, window_params = [{transform_indices = @transform_0, window_bounds = array<i64: 16, 128>}, {transform_indices = @transform_1, window_bounds = array<i64: 128, 512>}, {transform_indices = @transform_2, window_bounds = array<i64: 512, 128>}, {transform_indices = @transform_3, window_bounds = array<i64: 16, 128>}]} {
    %c0 = arith.constant 0 : index
    %c0_0 = arith.constant 0 : index
    %0 = vector.load %arg2[%c0, %c0_0] : memref<16x128xbf16, #tpu.memory_space<vmem>>, vector<16x128xbf16>
    %c0_1 = arith.constant 0 : index
    %c0_2 = arith.constant 0 : index
    %1 = vector.load %arg3[%c0_1, %c0_2] : memref<128x512xbf16, #tpu.memory_space<vmem>>, vector<128x512xbf16>
    %cst = arith.constant dense<0.000000e+00> : vector<16x512xf32>
    %2 = tpu.matmul %0, %1, %cst {dimension_numbers = #tpu.dot_dimension_numbers<[1], [0], [0], [1], [0, 0, 1, 1], [], []>} : vector<16x128xbf16>, vector<128x512xbf16>, vector<16x512xf32> -> vector<16x512xf32>
    %cst_3 = arith.constant 0.000000e+00 : f32
    %3 = vector.broadcast %cst_3 : f32 to vector<16x512xf32>
    %4 = arith.maximumf %2, %3 : vector<16x512xf32>
    %5 = arith.mulf %4, %4 : vector<16x512xf32>
    %6 = arith.truncf %5 : vector<16x512xf32> to vector<16x512xbf16>
    %c0_4 = arith.constant 0 : index
    %c0_5 = arith.constant 0 : index
    %7 = vector.load %arg4[%c0_4, %c0_5] : memref<512x128xbf16, #tpu.memory_space<vmem>>, vector<512x128xbf16>
    %cst_6 = arith.constant dense<0.000000e+00> : vector<16x128xf32>
    %8 = tpu.matmul %6, %7, %cst_6 {dimension_numbers = #tpu.dot_dimension_numbers<[1], [0], [0], [1], [0, 0, 1, 1], [], []>} : vector<16x512xbf16>, vector<512x128xbf16>, vector<16x128xf32> -> vector<16x128xf32>
    %c0_7 = arith.constant 0 : index
    %c0_8 = arith.constant 0 : index
    %9 = vector.load %arg5[%c0_7, %c0_8] : memref<16x128xf32, #tpu.memory_space<vmem>>, vector<16x128xf32>
    tpu.vector_store %arg5[%c0_7, %c0_8], %8 {strides = array<i32>} : memref<16x128xf32, #tpu.memory_space<vmem>>, vector<16x128xf32>,
    return
  }
  func.func @transform_0(%arg0: i32, %arg1: i32) -> (i32, i32) {
    %c0_i32 = arith.constant 0 : i32
    %c0_i32_0 = arith.constant 0 : i32
    return %arg0, %c0_i32 : i32, i32
  }
  func.func @transform_1(%arg0: i32, %arg1: i32) -> (i32, i32) {
    %c0_i32 = arith.constant 0 : i32
    %c0_i32_0 = arith.constant 0 : i32
    return %c0_i32, %arg1 : i32, i32
  }
  func.func @transform_2(%arg0: i32, %arg1: i32) -> (i32, i32) {
    %c0_i32 = arith.constant 0 : i32
    %c0_i32_0 = arith.constant 0 : i32
    return %arg1, %c0_i32 : i32, i32
  }
  func.func @transform_3(%arg0: i32, %arg1: i32) -> (i32, i32) {
    %c0_i32 = arith.constant 0 : i32
    %c0_i32_0 = arith.constant 0 : i32
    return %arg0, %c0_i32 : i32, i32
  }
}

</mosaic_0001>

<llo_original>
// kernel: rwkv_cmix_x070.1
$region0: #{rwkv_cmix_x070.1}
  #allocation0 [shape = 'u32[]', space=smem, size = 0x4, offset = 0x4, fixed_abs, tag = 'smem constant byte address 0x4 - core index']
  #allocation1 [shape = 'u32[144,128]{1,0:T(1,128)}', space=vmem, size = 0x12000, scoped, tag = 'internal scratch']
  %s0 = inlined_call_operand.vmem [shape: bf16[16,128], index: 0, kind: input, shape index: {}]
  %s1 = inlined_call_operand.vmem [shape: bf16[128,512], index: 1, kind: input, shape index: {}]
  %s2 = inlined_call_operand.vmem [shape: bf16[512,128], index: 2, kind: input, shape index: {}]
  %s3 = inlined_call_operand.hbm [shape: f32[16,128], index: 3, kind: output, shape index: {}]
  %s4 = sld [smem:[#allocation0]]
  $region22: #{rwkv_cmix_x070.1} parent=0
    _
  %s6 = ssub.s32 1, %s4
  %s7 = scalar_select 0, %s6, %s4
  $region1: #{rwkv_cmix_x070.1} parent=0
    #allocation2 [shape = 'u8[8192]{0}', space=vmem, size = 0x2000, scoped, tag = 'output window, operand 0, single buffered']
    #allocation3 [shape = 's32[1]{0}', space=sflag, size = 0x4, scoped, tag = 'scoped memory for rwkv_cmix_x070.1']
    %8 = vsyncpa [#allocation3], 0
    // Predicated region
    $region2: #{rwkv_cmix_x070.1} parent=1 // pred_check
      _
    $region3: #{rwkv_cmix_x070.1} parent=1 // pred_check_branch
      %10 = sbr.rel (0) target = $region5
    $region4: #{rwkv_cmix_x070.1} parent=1 // pred_region
      _
    $region5: #{rwkv_cmix_x070.1} parent=1 // pred_fallthru
      _
    // Predicated region
    $region6: #{rwkv_cmix_x070.1} parent=1 // pred_check
      _
    $region7: #{rwkv_cmix_x070.1} parent=1 // pred_check_branch
      %12 = sbr.rel (0) target = $region9
    $region8: #{rwkv_cmix_x070.1} parent=1 // pred_region
      _
    $region9: #{rwkv_cmix_x070.1} parent=1 // pred_fallthru
      _
    // Predicated region
    $region10: #{rwkv_cmix_x070.1} parent=1 // pred_check
      _
    $region11: #{rwkv_cmix_x070.1} parent=1 // pred_check_branch
      %14 = sbr.rel (0) target = $region13
    $region12: #{rwkv_cmix_x070.1} parent=1 // pred_region
      _
    $region13: #{rwkv_cmix_x070.1} parent=1 // pred_fallthru
      _
    %v16 = vld [vmem:[%s0] sm:$0xf]
    %v17 = vld [vmem:[%s0 + $0x4] sm:$0xf]
    %v18 = vld [vmem:[%s1] sm:$0xff]
    %v19 = vld [vmem:[%s1 + $0x8] sm:$0xff]
    %v20 = vld [vmem:[%s1 + $0x10] sm:$0xff]
    %v21 = vld [vmem:[%s1 + $0x18] sm:$0xff]
    %v22 = vld [vmem:[%s1 + $0x20] sm:$0xff]
    %v23 = vld [vmem:[%s1 + $0x28] sm:$0xff]
    %v24 = vld [vmem:[%s1 + $0x30] sm:$0xff]
    %v25 = vld [vmem:[%s1 + $0x38] sm:$0xff]
    %v26 = vld [vmem:[%s1 + $0x40] sm:$0xff]
    %v27 = vld [vmem:[%s1 + $0x48] sm:$0xff]
    %v28 = vld [vmem:[%s1 + $0x50] sm:$0xff]
    %v29 = vld [vmem:[%s1 + $0x58] sm:$0xff]
    %v30 = vld [vmem:[%s1 + $0x60] sm:$0xff]
    %v31 = vld [vmem:[%s1 + $0x68] sm:$0xff]
    %v32 = vld [vmem:[%s1 + $0x70] sm:$0xff]
    %v33 = vld [vmem:[%s1 + $0x78] sm:$0xff]
    %v34 = vld [vmem:[%s1 + $0x80] sm:$0xff]
    %v35 = vld [vmem:[%s1 + $0x88] sm:$0xff]
    %v36 = vld [vmem:[%s1 + $0x90] sm:$0xff]
    %v37 = vld [vmem:[%s1 + $0x98] sm:$0xff]
    %v38 = vld [vmem:[%s1 + $0xa0] sm:$0xff]
    %v39 = vld [vmem:[%s1 + $0xa8] sm:$0xff]
    %v40 = vld [vmem:[%s1 + $0xb0] sm:$0xff]
    %v41 = vld [vmem:[%s1 + $0xb8] sm:$0xff]
    %v42 = vld [vmem:[%s1 + $0xc0] sm:$0xff]
    %v43 = vld [vmem:[%s1 + $0xc8] sm:$0xff]
    %v44 = vld [vmem:[%s1 + $0xd0] sm:$0xff]
    %v45 = vld [vmem:[%s1 + $0xd8] sm:$0xff]
    %v46 = vld [vmem:[%s1 + $0xe0] sm:$0xff]
    %v47 = vld [vmem:[%s1 + $0xe8] sm:$0xff]
    %v48 = vld [vmem:[%s1 + $0xf0] sm:$0xff]
    %v49 = vld [vmem:[%s1 + $0xf8] sm:$0xff]
    %v52 = vunpack.c.l.b16 %v16
    %v53 = vunpack.c.l.b16 %v17
    %v54 = vpack.c.b16 %v53, %v52
    %v88 = vunpack.c.l.b16 %v18
    %v89 = vunpack.c.h.b16 %v18
    %v90 = vunpack.c.l.b16 %v19
    %v91 = vunpack.c.h.b16 %v19
    %v92 = vunpack.c.l.b16 %v20
    %v93 = vunpack.c.h.b16 %v20
    %v94 = vunpack.c.l.b16 %v21
    %v95 = vunpack.c.h.b16 %v21
    %v96 = vunpack.c.l.b16 %v22
    %v97 = vunpack.c.h.b16 %v22
    %v98 = vunpack.c.l.b16 %v23
    %v99 = vunpack.c.h.b16 %v23
    %v100 = vunpack.c.l.b16 %v24
    %v101 = vunpack.c.h.b16 %v24
    %v102 = vunpack.c.l.b16 %v25
    %v103 = vunpack.c.h.b16 %v25
    %v104 = vunpack.c.l.b16 %v26
    %v105 = vunpack.c.h.b16 %v26
    %v106 = vunpack.c.l.b16 %v27
    %v107 = vunpack.c.h.b16 %v27
    %v108 = vunpack.c.l.b16 %v28
    %v109 = vunpack.c.h.b16 %v28
    %v110 = vunpack.c.l.b16 %v29
    %v111 = vunpack.c.h.b16 %v29
    %v112 = vunpack.c.l.b16 %v30
    %v113 = vunpack.c.h.b16 %v30
    %v114 = vunpack.c.l.b16 %v31
    %v115 = vunpack.c.h.b16 %v31
    %v116 = vunpack.c.l.b16 %v32
    %v117 = vunpack.c.h.b16 %v32
    %v118 = vunpack.c.l.b16 %v33
    %v119 = vunpack.c.h.b16 %v33
    %v120 = vunpack.c.l.b16 %v34
    %v121 = vunpack.c.h.b16 %v34
    %v122 = vunpack.c.l.b16 %v35
    %v123 = vunpack.c.h.b16 %v35
    %v124 = vunpack.c.l.b16 %v36
    %v125 = vunpack.c.h.b16 %v36
    %v126 = vunpack.c.l.b16 %v37
    %v127 = vunpack.c.h.b16 %v37
    %v128 = vunpack.c.l.b16 %v38
    %v129 = vunpack.c.h.b16 %v38
    %v130 = vunpack.c.l.b16 %v39
    %v131 = vunpack.c.h.b16 %v39
    %v132 = vunpack.c.l.b16 %v40
    %v133 = vunpack.c.h.b16 %v40
    %v134 = vunpack.c.l.b16 %v41
    %v135 = vunpack.c.h.b16 %v41
    %v136 = vunpack.c.l.b16 %v42
    %v137 = vunpack.c.h.b16 %v42
    %v138 = vunpack.c.l.b16 %v43
    %v139 = vunpack.c.h.b16 %v43
    %v140 = vunpack.c.l.b16 %v44
    %v141 = vunpack.c.h.b16 %v44
    %v142 = vunpack.c.l.b16 %v45
    %v143 = vunpack.c.h.b16 %v45
    %v144 = vunpack.c.l.b16 %v46
    %v145 = vunpack.c.h.b16 %v46
    %v146 = vunpack.c.l.b16 %v47
    %v147 = vunpack.c.h.b16 %v47
    %v148 = vunpack.c.l.b16 %v48
    %v149 = vunpack.c.h.b16 %v48
    %v150 = vunpack.c.l.b16 %v49
    %v151 = vunpack.c.h.b16 %v49
    %v152 = vpack.c.b16 %v92, %v88
    %v153 = vpack.c.b16 %v93, %v89
    %v154 = vpack.c.b16 %v94, %v90
    %v155 = vpack.c.b16 %v95, %v91
    %v156 = vpack.c.b16 %v100, %v96
    %v157 = vpack.c.b16 %v101, %v97
    %v158 = vpack.c.b16 %v102, %v98
    %v159 = vpack.c.b16 %v103, %v99
    %v160 = vpack.c.b16 %v108, %v104
    %v161 = vpack.c.b16 %v109, %v105
    %v162 = vpack.c.b16 %v110, %v106
    %v163 = vpack.c.b16 %v111, %v107
    %v164 = vpack.c.b16 %v116, %v112
    %v165 = vpack.c.b16 %v117, %v113
    %v166 = vpack.c.b16 %v118, %v114
    %v167 = vpack.c.b16 %v119, %v115
    %v168 = vpack.c.b16 %v124, %v120
    %v169 = vpack.c.b16 %v125, %v121
    %v170 = vpack.c.b16 %v126, %v122
    %v171 = vpack.c.b16 %v127, %v123
    %v172 = vpack.c.b16 %v132, %v128
    %v173 = vpack.c.b16 %v133, %v129
    %v174 = vpack.c.b16 %v134, %v130
    %v175 = vpack.c.b16 %v135, %v131
    %v176 = vpack.c.b16 %v140, %v136
    %v177 = vpack.c.b16 %v141, %v137
    %v178 = vpack.c.b16 %v142, %v138
    %v179 = vpack.c.b16 %v143, %v139
    %v180 = vpack.c.b16 %v148, %v144
    %v181 = vpack.c.b16 %v149, %v145
    %v182 = vpack.c.b16 %v150, %v146
    %v183 = vpack.c.b16 %v151, %v147
    %216 = vmatprep.subr.bf16.mxu0 %v181
    %217 = vmatpush1.bf16.msra.mxu0 %v180
    %218 = vmatprep.subr.bf16.mxu0 %v177
    %219 = vmatpush1.bf16.msra.mxu0 %v176
    %220 = vmatprep.subr.bf16.mxu0 %v173
    %221 = vmatpush1.bf16.msra.mxu0 %v172
    %222 = vmatprep.subr.bf16.mxu0 %v169
    %223 = vmatpush1.bf16.msra.mxu0 %v168
    %224 = vmatprep.subr.bf16.mxu0 %v165
    %225 = vmatpush1.bf16.msra.mxu0 %v164
    %226 = vmatprep.subr.bf16.mxu0 %v161
    %227 = vmatpush1.bf16.msra.mxu0 %v160
    %228 = vmatprep.subr.bf16.mxu0 %v157
    %229 = vmatpush1.bf16.msra.mxu0 %v156
    %230 = vmatprep.subr.bf16.mxu0 %v153
    %231 = vmatpush1.bf16.msra.mxu0 %v152
    %232 = vmatprep.subr.bf16.mxu0 0
    %233 = vmatpush2.bf16.msra.mxu0 0
    %234 = vmatprep.subr.bf16.mxu0 0
    %235 = vmatpush2.bf16.msra.mxu0 0
    %236 = vmatprep.subr.bf16.mxu0 0
    %237 = vmatpush2.bf16.msra.mxu0 0
    %238 = vmatprep.subr.bf16.mxu0 0
    %239 = vmatpush2.bf16.msra.mxu0 0
    %240 = vmatprep.subr.bf16.mxu0 0
    %241 = vmatpush2.bf16.msra.mxu0 0
    %242 = vmatprep.subr.bf16.mxu0 0
    %243 = vmatpush2.bf16.msra.mxu0 0
    %244 = vmatprep.subr.bf16.mxu0 0
    %245 = vmatpush2.bf16.msra.mxu0 0
    %246 = vmatprep.subr.bf16.mxu0 0
    %247 = vmatpush2.bf16.msra.mxu0 0
    %248 = vmatprep.mubr.bf16.mxu0 0
    %249 = vmatmul.mubr.bf16.gmra.mxu0 %v54
    %v250 = vpop.f32.mrf.mxu0
    %v251 = vadd.f32 0.0, %v250
    %v252 = vpop.f32.mrf.mxu0
    %v253 = vadd.f32 0.0, %v252
    %v254 = vpop.f32.mrf.mxu0
    %v255 = vadd.f32 0.0, %v254
    %v256 = vpop.f32.mrf.mxu0
    %v257 = vadd.f32 0.0, %v256
    %258 = vdwg.mxu0
    %259 = vmatprep.subr.bf16.mxu0 %v183
    %260 = vmatpush1.bf16.msra.mxu0 %v182
    %261 = vmatprep.subr.bf16.mxu0 %v179
    %262 = vmatpush1.bf16.msra.mxu0 %v178
    %263 = vmatprep.subr.bf16.mxu0 %v175
    %264 = vmatpush1.bf16.msra.mxu0 %v174
    %265 = vmatprep.subr.bf16.mxu0 %v171
    %266 = vmatpush1.bf16.msra.mxu0 %v170
    %267 = vmatprep.subr.bf16.mxu0 %v167
    %268 = vmatpush1.bf16.msra.mxu0 %v166
    %269 = vmatprep.subr.bf16.mxu0 %v163
    %270 = vmatpush1.bf16.msra.mxu0 %v162
    %271 = vmatprep.subr.bf16.mxu0 %v159
    %272 = vmatpush1.bf16.msra.mxu0 %v158
    %273 = vmatprep.subr.bf16.mxu0 %v155
    %274 = vmatpush1.bf16.msra.mxu0 %v154
    %275 = vmatprep.subr.bf16.mxu0 0
    %276 = vmatpush2.bf16.msra.mxu0 0
    %277 = vmatprep.subr.bf16.mxu0 0
    %278 = vmatpush2.bf16.msra.mxu0 0
    %279 = vmatprep.subr.bf16.mxu0 0
    %280 = vmatpush2.bf16.msra.mxu0 0
    %281 = vmatprep.subr.bf16.mxu0 0
    %282 = vmatpush2.bf16.msra.mxu0 0
    %283 = vmatprep.subr.bf16.mxu0 0
    %284 = vmatpush2.bf16.msra.mxu0 0
    %285 = vmatprep.subr.bf16.mxu0 0
    %286 = vmatpush2.bf16.msra.mxu0 0
    %287 = vmatprep.subr.bf16.mxu0 0
    %288 = vmatpush2.bf16.msra.mxu0 0
    %289 = vmatprep.subr.bf16.mxu0 0
    %290 = vmatpush2.bf16.msra.mxu0 0
    %291 = vmatprep.mubr.bf16.mxu0 0
    %292 = vmatmul.mubr.bf16.gmra.mxu0 %v54
    %v293 = vpop.f32.mrf.mxu0
    %v294 = vadd.f32 0.0, %v293
    %v295 = vpop.f32.mrf.mxu0
    %v296 = vadd.f32 0.0, %v295
    %v297 = vpop.f32.mrf.mxu0
    %v298 = vadd.f32 0.0, %v297
    %v299 = vpop.f32.mrf.mxu0
    %v300 = vadd.f32 0.0, %v299
    %301 = vdwg.mxu0
    %v302 = vmax.f32 %v251, 0.0
    %v303 = vmax.f32 %v253, 0.0
    %v304 = vmax.f32 %v294, 0.0
    %v305 = vmax.f32 %v296, 0.0
    %v306 = vmax.f32 %v255, 0.0
    %v307 = vmax.f32 %v257, 0.0
    %v308 = vmax.f32 %v298, 0.0
    %v309 = vmax.f32 %v300, 0.0
    %v310 = vmul.f32 %v302, %v302
    %v311 = vmul.f32 %v303, %v303
    %v312 = vmul.f32 %v304, %v304
    %v313 = vmul.f32 %v305, %v305
    %v314 = vmul.f32 %v306, %v306
    %v315 = vmul.f32 %v307, %v307
    %v316 = vmul.f32 %v308, %v308
    %v317 = vmul.f32 %v309, %v309
    %v318 = vpack.c.bf16 %v314, %v310
    %v319 = vpack.c.bf16 %v315, %v311
    %v320 = vpack.c.bf16 %v316, %v312
    %v321 = vpack.c.bf16 %v317, %v313
    %v322 = vld [vmem:[%s2] sm:$0xf]
    %v323 = vld [vmem:[%s2 + $0x4] sm:$0xf]
    %v324 = vld [vmem:[%s2 + $0x8] sm:$0xf]
    %v325 = vld [vmem:[%s2 + $0xc] sm:$0xf]
    %v326 = vld [vmem:[%s2 + $0x10] sm:$0xf]
    %v327 = vld [vmem:[%s2 + $0x14] sm:$0xf]
    %v328 = vld [vmem:[%s2 + $0x18] sm:$0xf]
    %v329 = vld [vmem:[%s2 + $0x1c] sm:$0xf]
    %v330 = vld [vmem:[%s2 + $0x20] sm:$0xf]
    %v331 = vld [vmem:[%s2 + $0x24] sm:$0xf]
    %v332 = vld [vmem:[%s2 + $0x28] sm:$0xf]
    %v333 = vld [vmem:[%s2 + $0x2c] sm:$0xf]
    %v334 = vld [vmem:[%s2 + $0x30] sm:$0xf]
    %v335 = vld [vmem:[%s2 + $0x34] sm:$0xf]
    %v336 = vld [vmem:[%s2 + $0x38] sm:$0xf]
    %v337 = vld [vmem:[%s2 + $0x3c] sm:$0xf]
    %v338 = vld [vmem:[%s2 + $0x40] sm:$0xf]
    %v339 = vld [vmem:[%s2 + $0x44] sm:$0xf]
    %v340 = vld [vmem:[%s2 + $0x48] sm:$0xf]
    %v341 = vld [vmem:[%s2 + $0x4c] sm:$0xf]
    %v342 = vld [vmem:[%s2 + $0x50] sm:$0xf]
    %v343 = vld [vmem:[%s2 + $0x54] sm:$0xf]
    %v344 = vld [vmem:[%s2 + $0x58] sm:$0xf]
    %v345 = vld [vmem:[%s2 + $0x5c] sm:$0xf]
    %v346 = vld [vmem:[%s2 + $0x60] sm:$0xf]
    %v347 = vld [vmem:[%s2 + $0x64] sm:$0xf]
    %v348 = vld [vmem:[%s2 + $0x68] sm:$0xf]
    %v349 = vld [vmem:[%s2 + $0x6c] sm:$0xf]
    %v350 = vld [vmem:[%s2 + $0x70] sm:$0xf]
    %v351 = vld [vmem:[%s2 + $0x74] sm:$0xf]
    %v352 = vld [vmem:[%s2 + $0x78] sm:$0xf]
    %v353 = vld [vmem:[%s2 + $0x7c] sm:$0xf]
    %v354 = vld [vmem:[%s2 + $0x80] sm:$0xf]
    %v355 = vld [vmem:[%s2 + $0x84] sm:$0xf]
    %v356 = vld [vmem:[%s2 + $0x88] sm:$0xf]
    %v357 = vld [vmem:[%s2 + $0x8c] sm:$0xf]
    %v358 = vld [vmem:[%s2 + $0x90] sm:$0xf]
    %v359 = vld [vmem:[%s2 + $0x94] sm:$0xf]
    %v360 = vld [vmem:[%s2 + $0x98] sm:$0xf]
    %v361 = vld [vmem:[%s2 + $0x9c] sm:$0xf]
    %v362 = vld [vmem:[%s2 + $0xa0] sm:$0xf]
    %v363 = vld [vmem:[%s2 + $0xa4] sm:$0xf]
    %v364 = vld [vmem:[%s2 + $0xa8] sm:$0xf]
    %v365 = vld [vmem:[%s2 + $0xac] sm:$0xf]
    %v366 = vld [vmem:[%s2 + $0xb0] sm:$0xf]
    %v367 = vld [vmem:[%s2 + $0xb4] sm:$0xf]
    %v368 = vld [vmem:[%s2 + $0xb8] sm:$0xf]
    %v369 = vld [vmem:[%s2 + $0xbc] sm:$0xf]
    %v370 = vld [vmem:[%s2 + $0xc0] sm:$0xf]
    %v371 = vld [vmem:[%s2 + $0xc4] sm:$0xf]
    %v372 = vld [vmem:[%s2 + $0xc8] sm:$0xf]
    %v373 = vld [vmem:[%s2 + $0xcc] sm:$0xf]
    %v374 = vld [vmem:[%s2 + $0xd0] sm:$0xf]
    %v375 = vld [vmem:[%s2 + $0xd4] sm:$0xf]
    %v376 = vld [vmem:[%s2 + $0xd8] sm:$0xf]
    %v377 = vld [vmem:[%s2 + $0xdc] sm:$0xf]
    %v378 = vld [vmem:[%s2 + $0xe0] sm:$0xf]
    %v379 = vld [vmem:[%s2 + $0xe4] sm:$0xf]
    %v380 = vld [vmem:[%s2 + $0xe8] sm:$0xf]
    %v381 = vld [vmem:[%s2 + $0xec] sm:$0xf]
    %v382 = vld [vmem:[%s2 + $0xf0] sm:$0xf]
    %v383 = vld [vmem:[%s2 + $0xf4] sm:$0xf]
    %v384 = vld [vmem:[%s2 + $0xf8] sm:$0xf]
    %v385 = vld [vmem:[%s2 + $0xfc] sm:$0xf]
    %v450 = vunpack.c.l.b16 %v322
    %v451 = vunpack.c.l.b16 %v323
    %v452 = vunpack.c.l.b16 %v324
    %v453 = vunpack.c.l.b16 %v325
    %v454 = vunpack.c.l.b16 %v326
    %v455 = vunpack.c.l.b16 %v327
    %v456 = vunpack.c.l.b16 %v328
    %v457 = vunpack.c.l.b16 %v329
    %v458 = vunpack.c.l.b16 %v330
    %v459 = vunpack.c.l.b16 %v331
    %v460 = vunpack.c.l.b16 %v332
    %v461 = vunpack.c.l.b16 %v333
    %v462 = vunpack.c.l.b16 %v334
    %v463 = vunpack.c.l.b16 %v335
    %v464 = vunpack.c.l.b16 %v336
    %v465 = vunpack.c.l.b16 %v337
    %v466 = vunpack.c.l.b16 %v338
    %v467 = vunpack.c.l.b16 %v339
    %v468 = vunpack.c.l.b16 %v340
    %v469 = vunpack.c.l.b16 %v341
    %v470 = vunpack.c.l.b16 %v342
    %v471 = vunpack.c.l.b16 %v343
    %v472 = vunpack.c.l.b16 %v344
    %v473 = vunpack.c.l.b16 %v345
    %v474 = vunpack.c.l.b16 %v346
    %v475 = vunpack.c.l.b16 %v347
    %v476 = vunpack.c.l.b16 %v348
    %v477 = vunpack.c.l.b16 %v349
    %v478 = vunpack.c.l.b16 %v350
    %v479 = vunpack.c.l.b16 %v351
    %v480 = vunpack.c.l.b16 %v352
    %v481 = vunpack.c.l.b16 %v353
    %v482 = vunpack.c.l.b16 %v354
    %v483 = vunpack.c.l.b16 %v355
    %v484 = vunpack.c.l.b16 %v356
    %v485 = vunpack.c.l.b16 %v357
    %v486 = vunpack.c.l.b16 %v358
    %v487 = vunpack.c.l.b16 %v359
    %v488 = vunpack.c.l.b16 %v360
    %v489 = vunpack.c.l.b16 %v361
    %v490 = vunpack.c.l.b16 %v362
    %v491 = vunpack.c.l.b16 %v363
    %v492 = vunpack.c.l.b16 %v364
    %v493 = vunpack.c.l.b16 %v365
    %v494 = vunpack.c.l.b16 %v366
    %v495 = vunpack.c.l.b16 %v367
    %v496 = vunpack.c.l.b16 %v368
    %v497 = vunpack.c.l.b16 %v369
    %v498 = vunpack.c.l.b16 %v370
    %v499 = vunpack.c.l.b16 %v371
    %v500 = vunpack.c.l.b16 %v372
    %v501 = vunpack.c.l.b16 %v373
    %v502 = vunpack.c.l.b16 %v374
    %v503 = vunpack.c.l.b16 %v375
    %v504 = vunpack.c.l.b16 %v376
    %v505 = vunpack.c.l.b16 %v377
    %v506 = vunpack.c.l.b16 %v378
    %v507 = vunpack.c.l.b16 %v379
    %v508 = vunpack.c.l.b16 %v380
    %v509 = vunpack.c.l.b16 %v381
    %v510 = vunpack.c.l.b16 %v382
    %v511 = vunpack.c.l.b16 %v383
    %v512 = vunpack.c.l.b16 %v384
    %v513 = vunpack.c.l.b16 %v385
    %v514 = vpack.c.b16 %v451, %v450
    %v515 = vpack.c.b16 %v453, %v452
    %v516 = vpack.c.b16 %v455, %v454
    %v517 = vpack.c.b16 %v457, %v456
    %v518 = vpack.c.b16 %v459, %v458
    %v519 = vpack.c.b16 %v461, %v460
    %v520 = vpack.c.b16 %v463, %v462
    %v521 = vpack.c.b16 %v465, %v464
    %v522 = vpack.c.b16 %v467, %v466
    %v523 = vpack.c.b16 %v469, %v468
    %v524 = vpack.c.b16 %v471, %v470
    %v525 = vpack.c.b16 %v473, %v472
    %v526 = vpack.c.b16 %v475, %v474
    %v527 = vpack.c.b16 %v477, %v476
    %v528 = vpack.c.b16 %v479, %v478
    %v529 = vpack.c.b16 %v481, %v480
    %v530 = vpack.c.b16 %v483, %v482
    %v531 = vpack.c.b16 %v485, %v484
    %v532 = vpack.c.b16 %v487, %v486
    %v533 = vpack.c.b16 %v489, %v488
    %v534 = vpack.c.b16 %v491, %v490
    %v535 = vpack.c.b16 %v493, %v492
    %v536 = vpack.c.b16 %v495, %v494
    %v537 = vpack.c.b16 %v497, %v496
    %v538 = vpack.c.b16 %v499, %v498
    %v539 = vpack.c.b16 %v501, %v500
    %v540 = vpack.c.b16 %v503, %v502
    %v541 = vpack.c.b16 %v505, %v504
    %v542 = vpack.c.b16 %v507, %v506
    %v543 = vpack.c.b16 %v509, %v508
    %v544 = vpack.c.b16 %v511, %v510
    %v545 = vpack.c.b16 %v513, %v512
    %578 = vmatprep.subr.bf16.mxu0 0
    %579 = vmatpush1.bf16.msra.mxu0 %v521
    %580 = vmatprep.subr.bf16.mxu0 0
    %581 = vmatpush1.bf16.msra.mxu0 %v520
    %582 = vmatprep.subr.bf16.mxu0 0
    %583 = vmatpush1.bf16.msra.mxu0 %v519
    %584 = vmatprep.subr.bf16.mxu0 0
    %585 = vmatpush1.bf16.msra.mxu0 %v518
    %586 = vmatprep.subr.bf16.mxu0 0
    %587 = vmatpush1.bf16.msra.mxu0 %v517
    %588 = vmatprep.subr.bf16.mxu0 0
    %589 = vmatpush1.bf16.msra.mxu0 %v516
    %590 = vmatprep.subr.bf16.mxu0 0
    %591 = vmatpush1.bf16.msra.mxu0 %v515
    %592 = vmatprep.subr.bf16.mxu0 0
    %593 = vmatpush1.bf16.msra.mxu0 %v514
    %594 = vmatprep.subr.bf16.mxu0 0
    %595 = vmatpush2.bf16.msra.mxu0 %v529
    %596 = vmatprep.subr.bf16.mxu0 0
    %597 = vmatpush2.bf16.msra.mxu0 %v528
    %598 = vmatprep.subr.bf16.mxu0 0
    %599 = vmatpush2.bf16.msra.mxu0 %v527
    %600 = vmatprep.subr.bf16.mxu0 0
    %601 = vmatpush2.bf16.msra.mxu0 %v526
    %602 = vmatprep.subr.bf16.mxu0 0
    %603 = vmatpush2.bf16.msra.mxu0 %v525
    %604 = vmatprep.subr.bf16.mxu0 0
    %605 = vmatpush2.bf16.msra.mxu0 %v524
    %606 = vmatprep.subr.bf16.mxu0 0
    %607 = vmatpush2.bf16.msra.mxu0 %v523
    %608 = vmatprep.subr.bf16.mxu0 0
    %609 = vmatpush2.bf16.msra.mxu0 %v522
    %610 = vmatprep.mubr.bf16.mxu0 %v319
    %611 = vmatmul.mubr.bf16.gmra.mxu0 %v318
    %v612 = vpop.f32.mrf.mxu0
    %v613 = vadd.f32 0.0, %v612
    %v614 = vpop.f32.mrf.mxu0
    %v615 = vpop.f32.mrf.mxu0
    %v616 = vadd.f32 0.0, %v615
    %v617 = vpop.f32.mrf.mxu0
    %618 = vdwg.mxu0
    %619 = vmatprep.subr.bf16.mxu0 0
    %620 = vmatpush1.bf16.msra.mxu0 %v537
    %621 = vmatprep.subr.bf16.mxu0 0
    %622 = vmatpush1.bf16.msra.mxu0 %v536
    %623 = vmatprep.subr.bf16.mxu0 0
    %624 = vmatpush1.bf16.msra.mxu0 %v535
    %625 = vmatprep.subr.bf16.mxu0 0
    %626 = vmatpush1.bf16.msra.mxu0 %v534
    %627 = vmatprep.subr.bf16.mxu0 0
    %628 = vmatpush1.bf16.msra.mxu0 %v533
    %629 = vmatprep.subr.bf16.mxu0 0
    %630 = vmatpush1.bf16.msra.mxu0 %v532
    %631 = vmatprep.subr.bf16.mxu0 0
    %632 = vmatpush1.bf16.msra.mxu0 %v531
    %633 = vmatprep.subr.bf16.mxu0 0
    %634 = vmatpush1.bf16.msra.mxu0 %v530
    %635 = vmatprep.subr.bf16.mxu0 0
    %636 = vmatpush2.bf16.msra.mxu0 %v545
    %637 = vmatprep.subr.bf16.mxu0 0
    %638 = vmatpush2.bf16.msra.mxu0 %v544
    %639 = vmatprep.subr.bf16.mxu0 0
    %640 = vmatpush2.bf16.msra.mxu0 %v543
    %641 = vmatprep.subr.bf16.mxu0 0
    %642 = vmatpush2.bf16.msra.mxu0 %v542
    %643 = vmatprep.subr.bf16.mxu0 0
    %644 = vmatpush2.bf16.msra.mxu0 %v541
    %645 = vmatprep.subr.bf16.mxu0 0
    %646 = vmatpush2.bf16.msra.mxu0 %v540
    %647 = vmatprep.subr.bf16.mxu0 0
    %648 = vmatpush2.bf16.msra.mxu0 %v539
    %649 = vmatprep.subr.bf16.mxu0 0
    %650 = vmatpush2.bf16.msra.mxu0 %v538
    %651 = vmatprep.mubr.bf16.mxu0 %v321
    %652 = vmatmul.mubr.bf16.gmra.mxu0 %v320
    %v653 = vpop.f32.mrf.mxu0
    %v654 = vadd.f32 %v613, %v653
    %v655 = vpop.f32.mrf.mxu0
    %v656 = vpop.f32.mrf.mxu0
    %v657 = vadd.f32 %v616, %v656
    %v658 = vpop.f32.mrf.mxu0
    %659 = vdwg.mxu0
    %660 = vst [vmem:[#allocation2] sm:$0xff] %v654
    %661 = vst [vmem:[#allocation2 + $0x8] sm:$0xff] %v657
    // Predicated region
    $region14: #{rwkv_cmix_x070.1} parent=1 // pred_check
      _
    $region15: #{rwkv_cmix_x070.1} parent=1 // pred_check_branch
      %663 = sbr.rel (0) target = $region17
    $region16: #{rwkv_cmix_x070.1} parent=1 // pred_region
      %s665 = ssub.s32 256, 256
      %666 = vsyncadd [#allocation3], %s665
      %s667 = sshll.u32 [#allocation2], 4
      %s668 = int_to_ptr.vmem [resolvable:$true] %s667
      %673 = dma.vmem_to_hbm [thread:$0]  %s668, 256, %s3, [#allocation3], 128, 128, 8
    $region17: #{rwkv_cmix_x070.1} parent=1 // pred_fallthru
      _
    // Predicated region
    $region18: #{rwkv_cmix_x070.1} parent=1 // pred_check
      _
    $region19: #{rwkv_cmix_x070.1} parent=1 // pred_check_branch
      %675 = sbr.rel (0) target = $region21
    $region20: #{rwkv_cmix_x070.1} parent=1 // pred_region
      %676 = dma.done [#allocation3], 256
    $region21: #{rwkv_cmix_x070.1} parent=1 // pred_fallthru
      _
    %677 = vsyncpa [#allocation3], 1

</llo_original>
